<compile_context>
chip_gen: v6e
topology: v6e:2x2x1
jax: 0.10.0
libtpu: 0.0.40
codegen_flags: <defaults>
</compile_context>

<pallas_src>
import functools

import jax
import jax.numpy as jnp
from jax import lax
from jax.experimental import pallas as pl
from jax.experimental.pallas import tpu as pltpu

_LANE = 128
_SUB = 8
_PAD_LOGIT = -100.0   # sigmoid(-100) ~ 0, softplus(-100) ~ 0 -> zero contribution


def _bce_dice_kernel(x_ref, t_ref, num_ref, den_ref, bce_ref, *,
                     n_chunks, chunk_rows, tiles_per_split, tile_rows,
                     valid_rows, mask_rows, unroll):
    """One (C, TR, 128) row-tile of one sample.

    num_ref/den_ref : (C, 8, 128) resident output accumulators (dice num/den)
    bce_ref         : (8, 128)    resident output accumulator (BCE sum)
    The block is processed in `n_chunks` chunks of `chunk_rows` rows so that
    f32 temporaries stay small regardless of the DMA block size.
    """
    r = pl.program_id(2)

    @pl.when(r == 0)
    def _():
        num_ref[...] = jnp.zeros(num_ref.shape, num_ref.dtype)
        den_ref[...] = jnp.zeros(den_ref.shape, den_ref.dtype)
        bce_ref[...] = jnp.zeros(bce_ref.shape, bce_ref.dtype)

    C = x_ref.shape[0]
    L = x_ref.shape[-1]
    sg = chunk_rows // _SUB

    if mask_rows:
        # Logical (unclamped) first row of this block; rows >= valid_rows are
        # out-of-bounds garbage from the ragged/duplicated tile -> mask them.
        tile = pl.program_id(0) * tiles_per_split + r
        row0 = tile * tile_rows
        row_iota = lax.broadcasted_iota(jnp.int32, (chunk_rows, L), 0)

    def chunk(i, carry):
        nacc, dacc, bacc = carry
        off = i * chunk_rows
        if not isinstance(off, int):
            off = pl.multiple_of(off, chunk_rows)
        x = x_ref[:, pl.ds(off, chunk_rows), :].astype(jnp.float32)
        t = t_ref[:, pl.ds(off, chunk_rows), :].astype(jnp.float32)
        if mask_rows:
            valid = row_iota < (valid_rows - (row0 + i * chunk_rows))
            x = jnp.where(valid, x, _PAD_LOGIT)
            t = jnp.where(valid, t, 0.0)
        # sigmoid via a single EUP tanh (exact identity, no divide/select chain)
        p = 0.5 * jnp.tanh(0.5 * x) + 0.5
        # numerically stable BCE with logits: max(x,0) - x*t + log1p(exp(-|x|))
        bce = jnp.maximum(x, 0.0) - x * t + jnp.log1p(jnp.exp(-jnp.abs(x)))
        # Tile-preserving reshape + major-axis sums (pure VPU adds).
        pt = (p * t).reshape(C, sg, _SUB, L)
        dd = (p * p + t * t).reshape(C, sg, _SUB, L)
        bc = bce.reshape(C, sg, _SUB, L)
        nacc = nacc + jnp.sum(pt, axis=1)
        dacc = dacc + jnp.sum(dd, axis=1)
        bacc = bacc + jnp.sum(jnp.sum(bc, axis=1), axis=0)
        return nacc, dacc, bacc

    init = (jnp.zeros((C, _SUB, L), jnp.float32),
            jnp.zeros((C, _SUB, L), jnp.float32),
            jnp.zeros((_SUB, L), jnp.float32))
    if n_chunks == 1:
        nsum, dsum, bsum = chunk(0, init)
    else:
        nsum, dsum, bsum = lax.fori_loop(0, n_chunks, chunk, init, unroll=unroll)

    num_ref[...] += nsum
    den_ref[...] += dsum
    bce_ref[...] += bsum


def _vmem_budget():
    """Returns (per-input block bytes, vmem_limit_bytes) for the local chip."""
    try:
        vmem_cap = int(pltpu.get_tpu_info().vmem_capacity_bytes)
    except Exception:
        vmem_cap = 64 * 1024 * 1024
    if vmem_cap >= 96 * 1024 * 1024:                     # v5e / v6e (128 MiB VMEM)
        return 8 * 1024 * 1024, 64 * 1024 * 1024
    return 4 * 1024 * 1024, 40 * 1024 * 1024             # v7x (64 MiB) / unknown


def bce_dice_loss_with_logits(input_, target, *, alpha=1.0, beta=1.0, eps=1e-7):
    """Forward pass of BCEDiceLossWithLogits (channelwise=True). Returns scalar f32."""
    if input_.shape != target.shape:
        raise ValueError(
            f"Expect Dice input and target of same shape, got: "
            f"{input_.shape}, {target.shape}.")
    if input_.ndim < 2:
        raise ValueError("Input must be at least 2D (N, C, ...).")
    N, C = input_.shape[0], input_.shape[1]
    HW = 1
    for d in input_.shape[2:]:
        HW *= int(d)
    HW = max(HW, 1)
    total_elems = float(N * C * HW)
    itemsize = jnp.dtype(input_.dtype).itemsize

    block_bytes, vmem_limit = _vmem_budget()

    # ---- spatial axis -> rows of 128 lanes; pad only to the 128 boundary
    # (and to >= 8 rows for tiny inputs). Common case HW % 1024 == 0: NO pad,
    # hence no extra HBM copy in the wrapper.
    r_data = pl.cdiv(HW, _LANE)
    r_arr = max(r_data, _SUB)
    hw_pad = r_arr * _LANE

    x = input_.reshape(N, C, HW)
    t = target.reshape(N, C, HW)
    if hw_pad != HW:
        pad = hw_pad - HW
        x = jnp.pad(x, ((0, 0), (0, 0), (0, pad)), constant_values=_PAD_LOGIT)
        t = jnp.pad(t, ((0, 0), (0, 0), (0, pad)), constant_values=0.0)
    x = x.reshape(N, C, r_arr, _LANE)
    t = t.reshape(N, C, r_arr, _LANE)

    # ---- row-tile size: as large as the VMEM budget allows (multiple of 8),
    # spread evenly over the minimal number of tiles to avoid a tiny tail tile.
    tr_cap = max(_SUB, (block_bytes // (C * _LANE * itemsize)) // _SUB * _SUB)
    n_tiles = pl.cdiv(r_arr, tr_cap)
    tr_even = pl.cdiv(pl.cdiv(r_arr, n_tiles), _SUB) * _SUB
    TR = min(tr_even, max(_SUB, (r_arr // _SUB) * _SUB), tr_cap)
    grid_r = pl.cdiv(r_arr, TR)

    # ---- v7x megacore: when N == 1 split the row-tile range over two cores.
    NS = 2 if (N == 1 and grid_r >= 2) else 1
    per_split = pl.cdiv(grid_r, NS)
    covered_rows = NS * per_split * TR
    mask_rows = covered_rows > r_arr          # ragged / duplicated tiles exist
    clamp = NS * per_split > grid_r           # duplicated tile -> clamp index

    # ---- inner chunking: keep per-chunk f32 temporaries ~0.5 MiB.
    rc_target = max(_SUB, min(TR, (512 * 1024) // (C * _LANE * 4)))
    RC = (rc_target // _SUB) * _SUB
    while RC > _SUB and TR % RC != 0:
        RC -= _SUB
    n_chunks = TR // RC
    unroll = n_chunks <= 4

    if clamp:
        def in_map(s, n, r):
            return (n, 0, jnp.minimum(s * per_split + r, grid_r - 1), 0)
    else:
        def in_map(s, n, r):
            return (n, 0, s * per_split + r, 0)
    in_block = pl.BlockSpec((None, C, TR, _LANE), in_map)

    kernel = functools.partial(
        _bce_dice_kernel,
        n_chunks=n_chunks, chunk_rows=RC, tiles_per_split=per_split,
        tile_rows=TR, valid_rows=r_arr, mask_rows=mask_rows, unroll=unroll)

    cost = pl.CostEstimate(
        flops=int(14 * N * C * hw_pad),
        transcendentals=int(3 * N * C * hw_pad),
        bytes_accessed=int(2 * N * C * hw_pad * itemsize),
    )

    num_p, den_p, bce_p = pl.pallas_call(
        kernel,
        out_shape=(
            jax.ShapeDtypeStruct((NS, N, C, _SUB, _LANE), jnp.float32),
            jax.ShapeDtypeStruct((NS, N, C, _SUB, _LANE), jnp.float32),
            jax.ShapeDtypeStruct((NS, N, _SUB, _LANE), jnp.float32),
        ),
        grid_spec=pltpu.PrefetchScalarGridSpec(
            num_scalar_prefetch=0,
            grid=(NS, N, per_split),
            in_specs=[in_block, in_block],
            out_specs=[
                pl.BlockSpec((None, None, C, _SUB, _LANE),
                             lambda s, n, r: (s, n, 0, 0, 0)),
                pl.BlockSpec((None, None, C, _SUB, _LANE),
                             lambda s, n, r: (s, n, 0, 0, 0)),
                pl.BlockSpec((None, None, _SUB, _LANE),
                             lambda s, n, r: (s, n, 0, 0)),
            ],
        ),
        compiler_params=pltpu.CompilerParams(
            dimension_semantics=("parallel", "parallel", "arbitrary"),
            vmem_limit_bytes=vmem_limit,
        ),
        cost_estimate=cost,
    )(x, t)

    # ---- tiny plain-JAX epilogue: lane-dense partials -> scalar loss.
    num = jnp.sum(num_p, axis=(0, 1, 3, 4))           # (C,)
    den = jnp.sum(den_p, axis=(0, 1, 3, 4))           # (C,)
    score = 2.0 * num / jnp.maximum(den, eps)          # channelwise dice score
    dice_loss = jnp.sum(1.0 - score)                   # inverted, summed over C
    bce_loss = jnp.sum(bce_p) / total_elems            # mean over true elements
    return alpha * dice_loss + beta * bce_loss


def _reference_loss(input_, target, alpha=1.0, beta=1.0, eps=1e-7):
    """Plain-JAX reference mirroring the PyTorch module."""
    N, C = input_.shape[0], input_.shape[1]
    p = jax.nn.sigmoid(input_)
    pf = jnp.moveaxis(p, 1, 0).reshape(C, -1)
    tf = jnp.moveaxis(target, 1, 0).reshape(C, -1)
    num = jnp.sum(pf * tf, axis=-1)
    den = jnp.sum(pf * pf, axis=-1) + jnp.sum(tf * tf, axis=-1)
    dice = jnp.sum(1.0 - 2.0 * num / jnp.maximum(den, eps))
    x = input_
    bce = jnp.mean(jnp.maximum(x, 0.0) - x * target + jnp.log1p(jnp.exp(-jnp.abs(x))))
    return alpha * dice + beta * bce


if __name__ == "__main__":
    key = jax.random.PRNGKey(0)
    k1, k2, k3, k4 = jax.random.split(key, 4)

    # Case 1: small aligned-ish case (lane-pad path, single row tile).
    N, C, H, W = 2, 4, 16, 16
    logits = jax.random.normal(k1, (N, C, H, W), dtype=jnp.float32)
    target = jax.random.uniform(k2, (N, C, H, W), dtype=jnp.float32)
    loss = jax.block_until_ready(bce_dice_loss_with_logits(logits, target))
    ref = _reference_loss(logits, target)
    # rtol relaxed slightly (tanh-based sigmoid vs jax.nn.sigmoid numerics).
    assert jnp.allclose(loss, ref, rtol=1e-4, atol=1e-5), (loss, ref)

    # Case 2: N=1 with ragged row tiles -> exercises the in-kernel row mask
    # and the megacore row-range split.
    logits2 = jax.random.normal(k3, (1, 3, 40, 36), dtype=jnp.float32)
    target2 = jax.random.uniform(k4, (1, 3, 40, 36), dtype=jnp.float32)
    loss2 = jax.block_until_ready(bce_dice_loss_with_logits(logits2, target2))
    ref2 = _reference_loss(logits2, target2)
    assert jnp.allclose(loss2, ref2, rtol=1e-4, atol=1e-5), (loss2, ref2)

    print("KERNEL_OK")
</pallas_src>

<mosaic_0001>
module attributes {stable_mosaic.version = 11 : i64} {
  func.func @_bce_dice_kernel(%arg0: i32, %arg1: i32, %arg2: i32, %arg3: memref<1x4x8x128xf32, #tpu.memory_space<vmem>>, %arg4: memref<1x4x8x128xf32, #tpu.memory_space<vmem>>, %arg5: memref<1x1x4x8x128xf32, #tpu.memory_space<vmem>>, %arg6: memref<1x1x4x8x128xf32, #tpu.memory_space<vmem>>, %arg7: memref<1x1x8x128xf32, #tpu.memory_space<vmem>>) attributes {dimension_semantics = [#tpu.dimension_semantics<parallel>, #tpu.dimension_semantics<parallel>, #tpu.dimension_semantics<arbitrary>], iteration_bounds = array<i64: 1, 2, 1>, scalar_prefetch = 0 : i64, scratch_operands = 0 : i64, tpu.core_type = #tpu.core_type<tc>, window_params = [{transform_indices = @transform_0, window_bounds = array<i64: 1, 4, 8, 128>}, {transform_indices = @transform_1, window_bounds = array<i64: 1, 4, 8, 128>}, {transform_indices = @transform_2, window_bounds = array<i64: 1, 1, 4, 8, 128>}, {transform_indices = @transform_3, window_bounds = array<i64: 1, 1, 4, 8, 128>}, {transform_indices = @transform_4, window_bounds = array<i64: 1, 1, 8, 128>}]} {
    %c0_i32 = arith.constant 0 : i32
    %0 = arith.cmpi eq, %arg2, %c0_i32 : i32
    %1 = arith.extui %0 : i1 to i32
    %c0_i32_0 = arith.constant 0 : i32
    %2 = arith.cmpi ne, %1, %c0_i32_0 : i32
    scf.if %2 {
      %cst_47 = arith.constant 0.000000e+00 : f32
      %59 = vector.broadcast %cst_47 : f32 to vector<4x8x128xf32>
      %c0_48 = arith.constant 0 : index
      %c0_49 = arith.constant 0 : index
      %c0_50 = arith.constant 0 : index
      %c0_51 = arith.constant 0 : index
      %c0_52 = arith.constant 0 : index
      %60 = vector.load %arg5[%c0_48, %c0_49, %c0_50, %c0_51, %c0_52] : memref<1x1x4x8x128xf32, #tpu.memory_space<vmem>>, vector<1x1x4x8x128xf32>
      %61 = vector.shape_cast %60 : vector<1x1x4x8x128xf32> to vector<4x8x128xf32>
      %62 = vector.shape_cast %59 : vector<4x8x128xf32> to vector<1x1x4x8x128xf32>
      tpu.vector_store %arg5[%c0_48, %c0_49, %c0_50, %c0_51, %c0_52], %62 {strides = array<i32>} : memref<1x1x4x8x128xf32, #tpu.memory_space<vmem>>, vector<1x1x4x8x128xf32>,
      %cst_53 = arith.constant 0.000000e+00 : f32
      %63 = vector.broadcast %cst_53 : f32 to vector<4x8x128xf32>
      %c0_54 = arith.constant 0 : index
      %c0_55 = arith.constant 0 : index
      %c0_56 = arith.constant 0 : index
      %c0_57 = arith.constant 0 : index
      %c0_58 = arith.constant 0 : index
      %64 = vector.load %arg6[%c0_54, %c0_55, %c0_56, %c0_57, %c0_58] : memref<1x1x4x8x128xf32, #tpu.memory_space<vmem>>, vector<1x1x4x8x128xf32>
      %65 = vector.shape_cast %64 : vector<1x1x4x8x128xf32> to vector<4x8x128xf32>
      %66 = vector.shape_cast %63 : vector<4x8x128xf32> to vector<1x1x4x8x128xf32>
      tpu.vector_store %arg6[%c0_54, %c0_55, %c0_56, %c0_57, %c0_58], %66 {strides = array<i32>} : memref<1x1x4x8x128xf32, #tpu.memory_space<vmem>>, vector<1x1x4x8x128xf32>,
      %cst_59 = arith.constant 0.000000e+00 : f32
      %67 = vector.broadcast %cst_59 : f32 to vector<8x128xf32>
      %c0_60 = arith.constant 0 : index
      %c0_61 = arith.constant 0 : index
      %c0_62 = arith.constant 0 : index
      %c0_63 = arith.constant 0 : index
      %68 = vector.load %arg7[%c0_60, %c0_61, %c0_62, %c0_63] : memref<1x1x8x128xf32, #tpu.memory_space<vmem>>, vector<1x1x8x128xf32>
      %69 = vector.shape_cast %68 : vector<1x1x8x128xf32> to vector<8x128xf32>
      %70 = vector.shape_cast %67 : vector<8x128xf32> to vector<1x1x8x128xf32>
      tpu.vector_store %arg7[%c0_60, %c0_61, %c0_62, %c0_63], %70 {strides = array<i32>} : memref<1x1x8x128xf32, #tpu.memory_space<vmem>>, vector<1x1x8x128xf32>,
    } else {
    }
    %cst = arith.constant 0.000000e+00 : f32
    %3 = vector.broadcast %cst : f32 to vector<4x8x128xf32>
    %cst_1 = arith.constant 0.000000e+00 : f32
    %4 = vector.broadcast %cst_1 : f32 to vector<4x8x128xf32>
    %cst_2 = arith.constant 0.000000e+00 : f32
    %5 = vector.broadcast %cst_2 : f32 to vector<8x128xf32>
    %c0 = arith.constant 0 : index
    %c0_3 = arith.constant 0 : index
    %c0_4 = arith.constant 0 : index
    %c0_5 = arith.constant 0 : index
    %6 = vector.load %arg3[%c0, %c0_3, %c0_4, %c0_5] : memref<1x4x8x128xf32, #tpu.memory_space<vmem>>, vector<1x4x8x128xf32>
    %7 = vector.shape_cast %6 : vector<1x4x8x128xf32> to vector<4x8x128xf32>
    %c0_6 = arith.constant 0 : index
    %c0_7 = arith.constant 0 : index
    %c0_8 = arith.constant 0 : index
    %c0_9 = arith.constant 0 : index
    %8 = vector.load %arg4[%c0_6, %c0_7, %c0_8, %c0_9] : memref<1x4x8x128xf32, #tpu.memory_space<vmem>>, vector<1x4x8x128xf32>
    %9 = vector.shape_cast %8 : vector<1x4x8x128xf32> to vector<4x8x128xf32>
    %cst_10 = arith.constant 5.000000e-01 : f32
    %10 = vector.broadcast %cst_10 : f32 to vector<4x8x128xf32>
    %11 = arith.mulf %10, %7 : vector<4x8x128xf32>
    %12 = math.tanh %11 : vector<4x8x128xf32>
    %cst_11 = arith.constant 5.000000e-01 : f32
    %13 = vector.broadcast %cst_11 : f32 to vector<4x8x128xf32>
    %14 = arith.mulf %13, %12 : vector<4x8x128xf32>
    %cst_12 = arith.constant 5.000000e-01 : f32
    %15 = vector.broadcast %cst_12 : f32 to vector<4x8x128xf32>
    %16 = arith.addf %14, %15 : vector<4x8x128xf32>
    %cst_13 = arith.constant 0.000000e+00 : f32
    %17 = vector.broadcast %cst_13 : f32 to vector<4x8x128xf32>
    %18 = arith.maximumf %7, %17 : vector<4x8x128xf32>
    %19 = arith.mulf %7, %9 : vector<4x8x128xf32>
    %20 = arith.subf %18, %19 : vector<4x8x128xf32>
    %21 = math.absf %7 : vector<4x8x128xf32>
    %cst_14 = arith.constant 0.000000e+00 : f32
    %22 = vector.broadcast %cst_14 : f32 to vector<4x8x128xf32>
    %23 = arith.subf %22, %21 : vector<4x8x128xf32>
    %24 = math.exp %23 : vector<4x8x128xf32>
    %25 = math.log1p %24 : vector<4x8x128xf32>
    %26 = arith.addf %20, %25 : vector<4x8x128xf32>
    %27 = arith.mulf %16, %9 : vector<4x8x128xf32>
    %28 = vector.shape_cast %27 : vector<4x8x128xf32> to vector<4x1x8x128xf32>
    %29 = arith.mulf %16, %16 : vector<4x8x128xf32>
    %30 = arith.mulf %9, %9 : vector<4x8x128xf32>
    %31 = arith.addf %29, %30 : vector<4x8x128xf32>
    %32 = vector.shape_cast %31 : vector<4x8x128xf32> to vector<4x1x8x128xf32>
    %33 = vector.shape_cast %26 : vector<4x8x128xf32> to vector<4x1x8x128xf32>
    %cst_15 = arith.constant dense<0.000000e+00> : vector<4x8x128xf32>
    %34 = vector.multi_reduction <add>, %28, %cst_15 [1] : vector<4x1x8x128xf32> to vector<4x8x128xf32>
    %35 = arith.addf %3, %34 : vector<4x8x128xf32>
    %cst_16 = arith.constant dense<0.000000e+00> : vector<4x8x128xf32>
    %36 = vector.multi_reduction <add>, %32, %cst_16 [1] : vector<4x1x8x128xf32> to vector<4x8x128xf32>
    %37 = arith.addf %4, %36 : vector<4x8x128xf32>
    %cst_17 = arith.constant dense<0.000000e+00> : vector<4x8x128xf32>
    %38 = vector.multi_reduction <add>, %33, %cst_17 [1] : vector<4x1x8x128xf32> to vector<4x8x128xf32>
    %cst_18 = arith.constant dense<0.000000e+00> : vector<8x128xf32>
    %39 = vector.multi_reduction <add>, %38, %cst_18 [0] : vector<4x8x128xf32> to vector<8x128xf32>
    %40 = arith.addf %5, %39 : vector<8x128xf32>
    %c0_19 = arith.constant 0 : index
    %c0_20 = arith.constant 0 : index
    %c0_21 = arith.constant 0 : index
    %c0_22 = arith.constant 0 : index
    %c0_23 = arith.constant 0 : index
    %41 = vector.load %arg5[%c0_19, %c0_20, %c0_21, %c0_22, %c0_23] : memref<1x1x4x8x128xf32, #tpu.memory_space<vmem>>, vector<1x1x4x8x128xf32>
    %42 = vector.shape_cast %41 : vector<1x1x4x8x128xf32> to vector<4x8x128xf32>
    %43 = arith.addf %42, %35 : vector<4x8x128xf32>
    %c0_24 = arith.constant 0 : index
    %c0_25 = arith.constant 0 : index
    %c0_26 = arith.constant 0 : index
    %c0_27 = arith.constant 0 : index
    %c0_28 = arith.constant 0 : index
    %44 = vector.load %arg5[%c0_24, %c0_25, %c0_26, %c0_27, %c0_28] : memref<1x1x4x8x128xf32, #tpu.memory_space<vmem>>, vector<1x1x4x8x128xf32>
    %45 = vector.shape_cast %44 : vector<1x1x4x8x128xf32> to vector<4x8x128xf32>
    %46 = vector.shape_cast %43 : vector<4x8x128xf32> to vector<1x1x4x8x128xf32>
    tpu.vector_store %arg5[%c0_24, %c0_25, %c0_26, %c0_27, %c0_28], %46 {strides = array<i32>} : memref<1x1x4x8x128xf32, #tpu.memory_space<vmem>>, vector<1x1x4x8x128xf32>,
    %c0_29 = arith.constant 0 : index
    %c0_30 = arith.constant 0 : index
    %c0_31 = arith.constant 0 : index
    %c0_32 = arith.constant 0 : index
    %c0_33 = arith.constant 0 : index
    %47 = vector.load %arg6[%c0_29, %c0_30, %c0_31, %c0_32, %c0_33] : memref<1x1x4x8x128xf32, #tpu.memory_space<vmem>>, vector<1x1x4x8x128xf32>
    %48 = vector.shape_cast %47 : vector<1x1x4x8x128xf32> to vector<4x8x128xf32>
    %49 = arith.addf %48, %37 : vector<4x8x128xf32>
    %c0_34 = arith.constant 0 : index
    %c0_35 = arith.constant 0 : index
    %c0_36 = arith.constant 0 : index
    %c0_37 = arith.constant 0 : index
    %c0_38 = arith.constant 0 : index
    %50 = vector.load %arg6[%c0_34, %c0_35, %c0_36, %c0_37, %c0_38] : memref<1x1x4x8x128xf32, #tpu.memory_space<vmem>>, vector<1x1x4x8x128xf32>
    %51 = vector.shape_cast %50 : vector<1x1x4x8x128xf32> to vector<4x8x128xf32>
    %52 = vector.shape_cast %49 : vector<4x8x128xf32> to vector<1x1x4x8x128xf32>
    tpu.vector_store %arg6[%c0_34, %c0_35, %c0_36, %c0_37, %c0_38], %52 {strides = array<i32>} : memref<1x1x4x8x128xf32, #tpu.memory_space<vmem>>, vector<1x1x4x8x128xf32>,
    %c0_39 = arith.constant 0 : index
    %c0_40 = arith.constant 0 : index
    %c0_41 = arith.constant 0 : index
    %c0_42 = arith.constant 0 : index
    %53 = vector.load %arg7[%c0_39, %c0_40, %c0_41, %c0_42] : memref<1x1x8x128xf32, #tpu.memory_space<vmem>>, vector<1x1x8x128xf32>
    %54 = vector.shape_cast %53 : vector<1x1x8x128xf32> to vector<8x128xf32>
    %55 = arith.addf %54, %40 : vector<8x128xf32>
    %c0_43 = arith.constant 0 : index
    %c0_44 = arith.constant 0 : index
    %c0_45 = arith.constant 0 : index
    %c0_46 = arith.constant 0 : index
    %56 = vector.load %arg7[%c0_43, %c0_44, %c0_45, %c0_46] : memref<1x1x8x128xf32, #tpu.memory_space<vmem>>, vector<1x1x8x128xf32>
    %57 = vector.shape_cast %56 : vector<1x1x8x128xf32> to vector<8x128xf32>
    %58 = vector.shape_cast %55 : vector<8x128xf32> to vector<1x1x8x128xf32>
    tpu.vector_store %arg7[%c0_43, %c0_44, %c0_45, %c0_46], %58 {strides = array<i32>} : memref<1x1x8x128xf32, #tpu.memory_space<vmem>>, vector<1x1x8x128xf32>,
    return
  }
  func.func @transform_0(%arg0: i32, %arg1: i32, %arg2: i32) -> (i32, i32, i32, i32) {
    %c1_i32 = arith.constant 1 : i32
    %0 = arith.muli %arg0, %c1_i32 : i32
    %1 = arith.addi %0, %arg2 : i32
    %c0_i32 = arith.constant 0 : i32
    %c0_i32_0 = arith.constant 0 : i32
    %c0_i32_1 = arith.constant 0 : i32
    return %arg1, %c0_i32, %1, %c0_i32_0 : i32, i32, i32, i32
  }
  func.func @transform_1(%arg0: i32, %arg1: i32, %arg2: i32) -> (i32, i32, i32, i32) {
    %c1_i32 = arith.constant 1 : i32
    %0 = arith.muli %arg0, %c1_i32 : i32
    %1 = arith.addi %0, %arg2 : i32
    %c0_i32 = arith.constant 0 : i32
    %c0_i32_0 = arith.constant 0 : i32
    %c0_i32_1 = arith.constant 0 : i32
    return %arg1, %c0_i32, %1, %c0_i32_0 : i32, i32, i32, i32
  }
  func.func @transform_2(%arg0: i32, %arg1: i32, %arg2: i32) -> (i32, i32, i32, i32, i32) {
    %c0_i32 = arith.constant 0 : i32
    %c0_i32_0 = arith.constant 0 : i32
    %c0_i32_1 = arith.constant 0 : i32
    %c0_i32_2 = arith.constant 0 : i32
    return %arg0, %arg1, %c0_i32, %c0_i32_0, %c0_i32_1 : i32, i32, i32, i32, i32
  }
  func.func @transform_3(%arg0: i32, %arg1: i32, %arg2: i32) -> (i32, i32, i32, i32, i32) {
    %c0_i32 = arith.constant 0 : i32
    %c0_i32_0 = arith.constant 0 : i32
    %c0_i32_1 = arith.constant 0 : i32
    %c0_i32_2 = arith.constant 0 : i32
    return %arg0, %arg1, %c0_i32, %c0_i32_0, %c0_i32_1 : i32, i32, i32, i32, i32
  }
  func.func @transform_4(%arg0: i32, %arg1: i32, %arg2: i32) -> (i32, i32, i32, i32) {
    %c0_i32 = arith.constant 0 : i32
    %c0_i32_0 = arith.constant 0 : i32
    %c0_i32_1 = arith.constant 0 : i32
    return %arg0, %arg1, %c0_i32, %c0_i32_0 : i32, i32, i32, i32
  }
}

</mosaic_0001>

<llo_original>
// kernel: tpu_custom_call.1
$region0: #{tpu_custom_call.1}
  #allocation0 [shape = 'u32[]', space=smem, size = 0x4, offset = 0x4, fixed_abs, tag = 'smem constant byte address 0x4 - core index']
  #allocation1 [shape = 'u32[144,128]{1,0:T(1,128)}', space=vmem, size = 0x12000, scoped, tag = 'internal scratch']
  %s0 = inlined_call_operand.hbm [shape: f32[2,4,8,128], index: 0, kind: input, shape index: {}]
  %s1 = inlined_call_operand.hbm [shape: f32[2,4,8,128], index: 1, kind: input, shape index: {}]
  %s2 = inlined_call_operand.hbm [shape: f32[1,2,4,8,128], index: 2, kind: output, shape index: {0}]
  %s3 = inlined_call_operand.hbm [shape: f32[1,2,4,8,128], index: 3, kind: output, shape index: {1}]
  %s4 = inlined_call_operand.hbm [shape: f32[1,2,8,128], index: 4, kind: output, shape index: {2}]
  %5 = xla_tuple %s2, %s3, %s4
  %s6 = sld [smem:[#allocation0]]
  $region69: #{tpu_custom_call.1} parent=0
    _
  %s8 = ssub.s32 1, %s6
  %s9 = scalar_select 0, %s8, %s6
  $region1: #{tpu_custom_call.1} parent=0
    #allocation2 [shape = 'u8[32768]{0}', space=vmem, size = 0x8000, scoped, tag = 'input window, operand 0']
    #allocation3 [shape = 's32[2]{0}', space=sflag, size = 0x8, scoped, tag = 'scoped memory for tpu_custom_call.1']
    #allocation4 [shape = 's32[2]{0}', space=sflag, size = 0x8, scoped, tag = 'scoped memory for tpu_custom_call.1']
    #allocation5 [shape = 'u8[32768]{0}', space=vmem, size = 0x8000, scoped, tag = 'input window, operand 1']
    #allocation6 [shape = 's32[2]{0}', space=sflag, size = 0x8, scoped, tag = 'scoped memory for tpu_custom_call.1']
    #allocation7 [shape = 'u8[32768]{0}', space=vmem, size = 0x8000, scoped, tag = 'output window, operand 0']
    #allocation8 [shape = 'u8[32768]{0}', space=vmem, size = 0x8000, scoped, tag = 'output window, operand 1']
    #allocation9 [shape = 's32[2]{0}', space=sflag, size = 0x8, scoped, tag = 'scoped memory for tpu_custom_call.1']
    #allocation10 [shape = 'u8[8192]{0}', space=vmem, size = 0x2000, scoped, tag = 'output window, operand 2']
    %10 = vsyncpa [#allocation3], 0
    %s11 = scalar_lea.sflag [#allocation3], 1
    %12 = vsyncpa %s11, 0
    %13 = vsyncpa [#allocation6], 0
    %s14 = scalar_lea.sflag [#allocation6], 1
    %15 = vsyncpa %s14, 0
    %16 = vsyncpa [#allocation4], 0
    %s17 = scalar_lea.sflag [#allocation4], 1
    %18 = vsyncpa %s17, 0
    %19 = vsyncpa [#allocation9], 0
    %s20 = scalar_lea.sflag [#allocation9], 1
    %21 = vsyncpa %s20, 0
    loop: start=0, step=1, limit=4
    $region2: #{tpu_custom_call.1} parent=1 // loop_pre_header
      _
    $region3: #{tpu_custom_call.1} parent=1 // loop_header
      %s23 = sphi 0, %s27
      %p24 = scmp.ge.s32.totalorder %s23, 4
      %s30 = sphi 0, %s49
      %s31 = sphi 0, %s45
      %s32 = sphi 0, %s41
      %s33 = sphi 0, %s30
      %s34 = sphi 0, %s31
      %s35 = sphi 0, %s32
      %s36 = sphi 0, %s33
      %s37 = sphi 0, %s34
      %s38 = sphi 0, %s35
      %s56 = sphi 0, %s58
      %s59 = sphi 0, %s56
      %s60 = sphi 0, %s59
      %s76 = sphi 0, %s60
      %s86 = sphi 0, %s88
      %s89 = sphi 0, %s86
      %s90 = sphi 0, %s89
      %s106 = sphi 0, %s90
      %s114 = sphi 0, %s116
      %s117 = sphi 0, %s114
      %s118 = sphi 0, %s117
      %s134 = sphi 0, %s118
      %s142 = sphi 0, %s144
      %s145 = sphi 0, %s142
      %s146 = sphi 0, %s145
      %s162 = sphi 0, %s146
      %s170 = sphi 0, %s172
      %s173 = sphi 0, %s170
      %s174 = sphi 0, %s173
      %s190 = sphi 0, %s174
    $region4: #{tpu_custom_call.1} parent=1 // loop_header_branch
      %26 = sbr.rel (%p24) target = $region8
    $region5: #{tpu_custom_call.1} parent=1 // loop_body
      %s28 = ssub.s32 %s23, 1
      %s29 = ssub.s32 %s23, 2
      %s39 = sadd.s32 1, %s32
      %p40 = scmp.ge.s32.totalorder %s39, 1
      %s41 = scalar_select %p40, 0, %s39
      %s42 = sadd.s32 1, %s31
      %s43 = scalar_select %p40, %s42, %s31
      %p44 = scmp.ge.s32.totalorder %s43, 2
      %s45 = scalar_select %p44, 0, %s43
      %s46 = sadd.s32 1, %s30
      %s47 = scalar_select %p44, %s46, %s30
      %p48 = scmp.ge.s32.totalorder %s47, 1
      %s49 = scalar_select %p48, 0, %s47
      %s50 = sadd.s32 %s30, %s32
      %s51 = sadd.s32 %s49, %s41
      %s52 = ssub.s32 %s31, %s45
      %s53 = ssub.s32 %s50, %s51
      %s54 = sor.u32 %s52, %s53
      %p55 = scmp.eq.s32.totalorder %s54, 0
      %s57 = sadd.s32 %s56, 1
      %s58 = scalar_select %p55, %s56, %s57
      %p61 = pneg %p55
      %p62 = scmp.eq.s32.totalorder %s23, 1
      %p63 = por %p61, %p62
      %p64 = scmp.ne.s32.totalorder %s56, %s59
      %p65 = scmp.eq.s32.totalorder %s23, 0
      %p66 = por %p64, %p65
      %p67 = scmp.ne.s32.totalorder %s56, %s59
      %p68 = scmp.eq.s32.totalorder %s28, 1
      %p69 = por %p67, %p68
      %p70 = scmp.ne.s32.totalorder %s59, %s60
      %p71 = scmp.eq.s32.totalorder %s28, 0
      %p72 = por %p70, %p71
      %p73 = scmp.ne.s32.totalorder %s59, %s60
      %p74 = scmp.eq.s32.totalorder %s29, 1
      %p75 = por %p73, %p74
      %p77 = scmp.ne.s32.totalorder %s60, %s76
      %p78 = scmp.eq.s32.totalorder %s29, 0
      %p79 = por %p77, %p78
      %s80 = sadd.s32 %s30, %s32
      %s81 = sadd.s32 %s49, %s41
      %s82 = ssub.s32 %s31, %s45
      %s83 = ssub.s32 %s80, %s81
      %s84 = sor.u32 %s82, %s83
      %p85 = scmp.eq.s32.totalorder %s84, 0
      %s87 = sadd.s32 %s86, 1
      %s88 = scalar_select %p85, %s86, %s87
      %p91 = pneg %p85
      %p92 = scmp.eq.s32.totalorder %s23, 1
      %p93 = por %p91, %p92
      %p94 = scmp.ne.s32.totalorder %s86, %s89
      %p95 = scmp.eq.s32.totalorder %s23, 0
      %p96 = por %p94, %p95
      %p97 = scmp.ne.s32.totalorder %s86, %s89
      %p98 = scmp.eq.s32.totalorder %s28, 1
      %p99 = por %p97, %p98
      %p100 = scmp.ne.s32.totalorder %s89, %s90
      %p101 = scmp.eq.s32.totalorder %s28, 0
      %p102 = por %p100, %p101
      %p103 = scmp.ne.s32.totalorder %s89, %s90
      %p104 = scmp.eq.s32.totalorder %s29, 1
      %p105 = por %p103, %p104
      %p107 = scmp.ne.s32.totalorder %s90, %s106
      %p108 = scmp.eq.s32.totalorder %s29, 0
      %p109 = por %p107, %p108
      %s110 = ssub.s32 %s30, %s49
      %s111 = ssub.s32 %s31, %s45
      %s112 = sor.u32 %s110, %s111
      %p113 = scmp.eq.s32.totalorder %s112, 0
      %s115 = sadd.s32 %s114, 1
      %s116 = scalar_select %p113, %s114, %s115
      %p119 = pneg %p113
      %p120 = scmp.eq.s32.totalorder %s23, 1
      %p121 = por %p119, %p120
      %p122 = scmp.ne.s32.totalorder %s114, %s117
      %p123 = scmp.eq.s32.totalorder %s23, 0
      %p124 = por %p122, %p123
      %p125 = scmp.ne.s32.totalorder %s114, %s117
      %p126 = scmp.eq.s32.totalorder %s28, 1
      %p127 = por %p125, %p126
      %p128 = scmp.ne.s32.totalorder %s117, %s118
      %p129 = scmp.eq.s32.totalorder %s28, 0
      %p130 = por %p128, %p129
      %p131 = scmp.ne.s32.totalorder %s117, %s118
      %p132 = scmp.eq.s32.totalorder %s29, 1
      %p133 = por %p131, %p132
      %p135 = scmp.ne.s32.totalorder %s118, %s134
      %p136 = scmp.eq.s32.totalorder %s29, 0
      %p137 = por %p135, %p136
      %s138 = ssub.s32 %s30, %s49
      %s139 = ssub.s32 %s31, %s45
      %s140 = sor.u32 %s138, %s139
      %p141 = scmp.eq.s32.totalorder %s140, 0
      %s143 = sadd.s32 %s142, 1
      %s144 = scalar_select %p141, %s142, %s143
      %p147 = pneg %p141
      %p148 = scmp.eq.s32.totalorder %s23, 1
      %p149 = por %p147, %p148
      %p150 = scmp.ne.s32.totalorder %s142, %s145
      %p151 = scmp.eq.s32.totalorder %s23, 0
      %p152 = por %p150, %p151
      %p153 = scmp.ne.s32.totalorder %s142, %s145
      %p154 = scmp.eq.s32.totalorder %s28, 1
      %p155 = por %p153, %p154
      %p156 = scmp.ne.s32.totalorder %s145, %s146
      %p157 = scmp.eq.s32.totalorder %s28, 0
      %p158 = por %p156, %p157
      %p159 = scmp.ne.s32.totalorder %s145, %s146
      %p160 = scmp.eq.s32.totalorder %s29, 1
      %p161 = por %p159, %p160
      %p163 = scmp.ne.s32.totalorder %s146, %s162
      %p164 = scmp.eq.s32.totalorder %s29, 0
      %p165 = por %p163, %p164
      %s166 = ssub.s32 %s30, %s49
      %s167 = ssub.s32 %s31, %s45
      %s168 = sor.u32 %s166, %s167
      %p169 = scmp.eq.s32.totalorder %s168, 0
      %s171 = sadd.s32 %s170, 1
      %s172 = scalar_select %p169, %s170, %s171
      %p175 = pneg %p169
      %p176 = scmp.eq.s32.totalorder %s23, 1
      %p177 = por %p175, %p176
      %p178 = scmp.ne.s32.totalorder %s170, %s173
      %p179 = scmp.eq.s32.totalorder %s23, 0
      %p180 = por %p178, %p179
      %p181 = scmp.ne.s32.totalorder %s170, %s173
      %p182 = scmp.eq.s32.totalorder %s28, 1
      %p183 = por %p181, %p182
      %p184 = scmp.ne.s32.totalorder %s173, %s174
      %p185 = scmp.eq.s32.totalorder %s28, 0
      %p186 = por %p184, %p185
      %p187 = scmp.ne.s32.totalorder %s173, %s174
      %p188 = scmp.eq.s32.totalorder %s29, 1
      %p189 = por %p187, %p188
      %p191 = scmp.ne.s32.totalorder %s174, %s190
      %p192 = scmp.eq.s32.totalorder %s29, 0
      %p193 = por %p191, %p192
      %p194 = scmp.le.s32.totalorder 1, %s23
      %p195 = scmp.lt.s32.totalorder %s23, 3
      %p196 = pnand %p194, %p195
      %p197 = pneg %p196
      // Predicated region
      $region9: #{tpu_custom_call.1} parent=5 // pred_check
        _
      $region10: #{tpu_custom_call.1} parent=5 // pred_check_branch
        %199 = sbr.rel (%p196) target = $region12
      $region11: #{tpu_custom_call.1} parent=5 // pred_region
        %s200 = ssub.s32 %s23, 1
      $region12: #{tpu_custom_call.1} parent=5 // pred_fallthru
        _
      %p201 = scmp.lt.s32.totalorder %s23, 2
      // Predicated region
      $region13: #{tpu_custom_call.1} parent=5 // pred_check
        %p202 = pneg %p201
      $region14: #{tpu_custom_call.1} parent=5 // pred_check_branch
        %204 = sbr.rel (%p202) target = $region16
      $region15: #{tpu_custom_call.1} parent=5 // pred_region
        // Predicated region
        $region17: #{tpu_custom_call.1} parent=15 // pred_check
          %p205 = pneg %p66
        $region18: #{tpu_custom_call.1} parent=15 // pred_check_branch
          %207 = sbr.rel (%p205) target = $region20
        $region19: #{tpu_custom_call.1} parent=15 // pred_region
          %s208 = sand.u32 %s56, 1
          %s209 = scalar_lea.sflag [#allocation3], %s208
          %s210 = sand.u32 %s56, 1
          %s211 = smul.addr %s210, 32
          %s212 = scalar_lea.vmem [#allocation2], %s211
          %s213 = sadd.s32 %s30, %s32
          %s215 = ssub.s32 512, 512
          %216 = vsyncadd %s209, %s215
          %s217 = smul.addr %s31, 4
          %s218 = sadd.s32 %s213, %s217
          %s219 = smul.addr %s218, 128
          %s220 = scalar_lea.hbm %s0, %s219
          %s221 = sshll.u32 %s212, 4
          %s222 = int_to_ptr.vmem [resolvable:$true] %s221
          %227 = dma.hbm_to_vmem [thread:$0]  %s220, 512, %s222, %s209, 128, 128, 8
        $region20: #{tpu_custom_call.1} parent=15 // pred_fallthru
          _
        // Predicated region
        $region21: #{tpu_custom_call.1} parent=15 // pred_check
          %p228 = pneg %p96
        $region22: #{tpu_custom_call.1} parent=15 // pred_check_branch
          %230 = sbr.rel (%p228) target = $region24
        $region23: #{tpu_custom_call.1} parent=15 // pred_region
          %s231 = sand.u32 %s86, 1
          %s232 = scalar_lea.sflag [#allocation6], %s231
          %s233 = sand.u32 %s86, 1
          %s234 = smul.addr %s233, 32
          %s235 = scalar_lea.vmem [#allocation5], %s234
          %s236 = sadd.s32 %s30, %s32
          %s238 = ssub.s32 512, 512
          %239 = vsyncadd %s232, %s238
          %s240 = smul.addr %s31, 4
          %s241 = sadd.s32 %s236, %s240
          %s242 = smul.addr %s241, 128
          %s243 = scalar_lea.hbm %s1, %s242
          %s244 = sshll.u32 %s235, 4
          %s245 = int_to_ptr.vmem [resolvable:$true] %s244
          %250 = dma.hbm_to_vmem [thread:$0]  %s243, 512, %s245, %s232, 128, 128, 8
        $region24: #{tpu_custom_call.1} parent=15 // pred_fallthru
          _
      $region16: #{tpu_custom_call.1} parent=5 // pred_fallthru
        _
      %p251 = scmp.le.s32.totalorder 1, %s23
      %p252 = scmp.lt.s32.totalorder %s23, 3
      %p253 = pnand %p251, %p252
      %p254 = pneg %p253
      // Predicated region
      $region25: #{tpu_custom_call.1} parent=5 // pred_check
        _
      $region26: #{tpu_custom_call.1} parent=5 // pred_check_branch
        %256 = sbr.rel (%p253) target = $region28
      $region27: #{tpu_custom_call.1} parent=5 // pred_region
        %s257 = ssub.s32 %s23, 1
        %s258 = sand.u32 %s59, 1
        %s259 = scalar_lea.sflag [#allocation3], %s258
        %s260 = sand.u32 %s59, 1
        %s261 = smul.addr %s260, 32
        %s262 = scalar_lea.vmem [#allocation2], %s261
        // Predicated region
        $region29: #{tpu_custom_call.1} parent=27 // pred_check
          %p263 = pneg %p72
        $region30: #{tpu_custom_call.1} parent=27 // pred_check_branch
          %265 = sbr.rel (%p263) target = $region32
        $region31: #{tpu_custom_call.1} parent=27 // pred_region
          %266 = dma.done %s259, 512
        $region32: #{tpu_custom_call.1} parent=27 // pred_fallthru
          _
        %s267 = sand.u32 %s89, 1
        %s268 = scalar_lea.sflag [#allocation6], %s267
        %s269 = sand.u32 %s89, 1
        %s270 = smul.addr %s269, 32
        %s271 = scalar_lea.vmem [#allocation5], %s270
        // Predicated region
        $region33: #{tpu_custom_call.1} parent=27 // pred_check
          %p272 = pneg %p102
        $region34: #{tpu_custom_call.1} parent=27 // pred_check_branch
          %274 = sbr.rel (%p272) target = $region36
        $region35: #{tpu_custom_call.1} parent=27 // pred_region
          %275 = dma.done %s268, 512
        $region36: #{tpu_custom_call.1} parent=27 // pred_fallthru
          _
        %s276 = sand.u32 %s59, 1
        %s277 = scalar_lea.sflag [#allocation3], %s276
        %s278 = sand.u32 %s59, 1
        %s279 = smul.addr %s278, 32
        %s280 = scalar_lea.vmem [#allocation2], %s279
        %p281 = pneg %p72
        %p282 = pneg %p69
        %s283 = sand.u32 %s89, 1
        %s284 = scalar_lea.sflag [#allocation6], %s283
        %s285 = sand.u32 %s89, 1
        %s286 = smul.addr %s285, 32
        %s287 = scalar_lea.vmem [#allocation5], %s286
        %p288 = pneg %p102
        %p289 = pneg %p99
        %p290 = pneg %p130
        %p291 = pneg %p127
        %s292 = sand.u32 %s117, 1
        %s293 = scalar_lea.sflag [#allocation4], %s292
        %s294 = sand.u32 %s117, 1
        %s295 = smul.addr %s294, 32
        %s296 = scalar_lea.vmem [#allocation7], %s295
        %p297 = pneg %p158
        %p298 = pneg %p155
        %s299 = sand.u32 %s28, 1
        %s300 = scalar_lea.sflag [#allocation9], %s299
        %s301 = sand.u32 %s145, 1
        %s302 = smul.addr %s301, 32
        %s303 = scalar_lea.vmem [#allocation8], %s302
        %p304 = pneg %p186
        %p305 = pneg %p183
        %s306 = sand.u32 %s28, 1
        %s307 = scalar_lea.sflag [#allocation9], %s306
        %s308 = sand.u32 %s173, 1
        %s309 = smul.addr %s308, 8
        %s310 = scalar_lea.vmem [#allocation10], %s309
        %s311 = sadd.s32 %s33, %s35
        %s312 = sadd.s32 %s33, %s35
        %p313 = scmp.eq.s32.totalorder %s35, 0
        // Predicated region
        $region37: #{tpu_custom_call.1} parent=27 // pred_check
          %p314 = pneg %p313
        $region38: #{tpu_custom_call.1} parent=27 // pred_check_branch
          %316 = sbr.rel (%p314) target = $region40
        $region39: #{tpu_custom_call.1} parent=27 // pred_region
          %317 = vst [vmem:[%s296] sm:$0xff] 0.0
          %318 = vst [vmem:[%s296 + $0x8] sm:$0xff] 0.0
          %319 = vst [vmem:[%s296 + $0x10] sm:$0xff] 0.0
          %320 = vst [vmem:[%s296 + $0x18] sm:$0xff] 0.0
          %321 = vst [vmem:[%s303] sm:$0xff] 0.0
          %322 = vst [vmem:[%s303 + $0x8] sm:$0xff] 0.0
          %323 = vst [vmem:[%s303 + $0x10] sm:$0xff] 0.0
          %324 = vst [vmem:[%s303 + $0x18] sm:$0xff] 0.0
          %325 = vst [vmem:[%s310] sm:$0xff] 0.0
        $region40: #{tpu_custom_call.1} parent=27 // pred_fallthru
          _
        %v326 = vld [vmem:[%s262] sm:$0xff]
        %v327 = vld [vmem:[%s262 + $0x8] sm:$0xff]
        %v328 = vld [vmem:[%s262 + $0x10] sm:$0xff]
        %v329 = vld [vmem:[%s262 + $0x18] sm:$0xff]
        %v330 = vld [vmem:[%s271] sm:$0xff]
        %v331 = vld [vmem:[%s271 + $0x8] sm:$0xff]
        %v332 = vld [vmem:[%s271 + $0x10] sm:$0xff]
        %v333 = vld [vmem:[%s271 + $0x18] sm:$0xff]
        %v334 = vmul.f32 %v326, 0.5
        %v335 = vmul.f32 %v327, 0.5
        %v336 = vmul.f32 %v328, 0.5
        %v337 = vmul.f32 %v329, 0.5
        %v338 = vtanh.pop %v334
        %v339 = vtanh.pop %v335
        %v340 = vtanh.pop %v336
        %v341 = vtanh.pop %v337
        %v342 = vmul.f32 %v338, 0.5
        %v343 = vmul.f32 %v339, 0.5
        %v344 = vmul.f32 %v340, 0.5
        %v345 = vmul.f32 %v341, 0.5
        %v346 = vadd.f32 %v342, 0.5
        %v347 = vadd.f32 %v343, 0.5
        %v348 = vadd.f32 %v344, 0.5
        %v349 = vadd.f32 %v345, 0.5
        %v350 = vmax.f32 %v326, 0.0
        %v351 = vmax.f32 %v327, 0.0
        %v352 = vmax.f32 %v328, 0.0
        %v353 = vmax.f32 %v329, 0.0
        %v354 = vmul.f32 %v326, %v330
        %v355 = vmul.f32 %v327, %v331
        %v356 = vmul.f32 %v328, %v332
        %v357 = vmul.f32 %v329, %v333
        %v358 = vsub.f32 %v350, %v354
        %v359 = vsub.f32 %v351, %v355
        %v360 = vsub.f32 %v352, %v356
        %v361 = vsub.f32 %v353, %v357
        %v362 = vand.u32 2147483647, %v326
        %v363 = vand.u32 2147483647, %v327
        %v364 = vand.u32 2147483647, %v328
        %v365 = vand.u32 2147483647, %v329
        %v366 = vsub.f32 0.0, %v362
        %v367 = vsub.f32 0.0, %v363
        %v368 = vsub.f32 0.0, %v364
        %v369 = vsub.f32 0.0, %v365
        %v370 = vmul.f32 %v366, 1.442695
        %v371 = vpow.pop %v370
        %v372 = vmul.f32 %v367, 1.442695
        %v373 = vpow.pop %v372
        %v374 = vmul.f32 %v368, 1.442695
        %v375 = vpow.pop %v374
        %v376 = vmul.f32 %v369, 1.442695
        %v377 = vpow.pop %v376
        %v378 = vadd.f32 %v371, 1.0
        %v379 = vlog2.pop %v378
        %v380 = vmul.f32 %v379, 0.6931472
        %v381 = vmul.f32 -0.5, %v371
        %v382 = vadd.f32 %v381, 1.0
        %v383 = vmul.f32 %v382, %v371
        %v384 = vand.u32 2147483647, %v371
        %vm385 = vcmp.lt.f32.partialorder %v384, 0.0004427343
        %v386 = vsel %vm385, %v383, %v380
        %v387 = vadd.f32 %v373, 1.0
        %v388 = vlog2.pop %v387
        %v389 = vmul.f32 %v388, 0.6931472
        %v390 = vmul.f32 -0.5, %v373
        %v391 = vadd.f32 %v390, 1.0
        %v392 = vmul.f32 %v391, %v373
        %v393 = vand.u32 2147483647, %v373
        %vm394 = vcmp.lt.f32.partialorder %v393, 0.0004427343
        %v395 = vsel %vm394, %v392, %v389
        %v396 = vadd.f32 %v375, 1.0
        %v397 = vlog2.pop %v396
        %v398 = vmul.f32 %v397, 0.6931472
        %v399 = vmul.f32 -0.5, %v375
        %v400 = vadd.f32 %v399, 1.0
        %v401 = vmul.f32 %v400, %v375
        %v402 = vand.u32 2147483647, %v375
        %vm403 = vcmp.lt.f32.partialorder %v402, 0.0004427343
        %v404 = vsel %vm403, %v401, %v398
        %v405 = vadd.f32 %v377, 1.0
        %v406 = vlog2.pop %v405
        %v407 = vmul.f32 %v406, 0.6931472
        %v408 = vmul.f32 -0.5, %v377
        %v409 = vadd.f32 %v408, 1.0
        %v410 = vmul.f32 %v409, %v377
        %v411 = vand.u32 2147483647, %v377
        %vm412 = vcmp.lt.f32.partialorder %v411, 0.0004427343
        %v413 = vsel %vm412, %v410, %v407
        %v414 = vadd.f32 %v358, %v386
        %v415 = vadd.f32 %v359, %v395
        %v416 = vadd.f32 %v360, %v404
        %v417 = vadd.f32 %v361, %v413
        %v418 = vmul.f32 %v346, %v330
        %v419 = vmul.f32 %v347, %v331
        %v420 = vmul.f32 %v348, %v332
        %v421 = vmul.f32 %v349, %v333
        %v422 = vmul.f32 %v346, %v346
        %v423 = vmul.f32 %v347, %v347
        %v424 = vmul.f32 %v348, %v348
        %v425 = vmul.f32 %v349, %v349
        %v426 = vmul.f32 %v330, %v330
        %v427 = vmul.f32 %v331, %v331
        %v428 = vmul.f32 %v332, %v332
        %v429 = vmul.f32 %v333, %v333
        %v430 = vadd.f32 %v422, %v426
        %v431 = vadd.f32 %v423, %v427
        %v432 = vadd.f32 %v424, %v428
        %v433 = vadd.f32 %v425, %v429
        %v434 = vadd.f32 %v418, 0.0
        %v435 = vadd.f32 %v419, 0.0
        %v436 = vadd.f32 %v420, 0.0
        %v437 = vadd.f32 %v421, 0.0
        %v438 = vadd.f32 %v434, 0.0
        %v439 = vadd.f32 %v435, 0.0
        %v440 = vadd.f32 %v436, 0.0
        %v441 = vadd.f32 %v437, 0.0
        %v442 = vadd.f32 %v430, 0.0
        %v443 = vadd.f32 %v431, 0.0
        %v444 = vadd.f32 %v432, 0.0
        %v445 = vadd.f32 %v433, 0.0
        %v446 = vadd.f32 %v442, 0.0
        %v447 = vadd.f32 %v443, 0.0
        %v448 = vadd.f32 %v444, 0.0
        %v449 = vadd.f32 %v445, 0.0
        %v450 = vadd.f32 %v414, 0.0
        %v451 = vadd.f32 %v415, 0.0
        %v452 = vadd.f32 %v416, 0.0
        %v453 = vadd.f32 %v417, 0.0
        %v454 = vadd.f32 %v450, %v451
        %v455 = vadd.f32 %v454, %v452
        %v456 = vadd.f32 %v455, %v453
        %v457 = vadd.f32 %v456, 0.0
        %v458 = vld [vmem:[%s296] sm:$0xff]
        %v459 = vld [vmem:[%s296 + $0x8] sm:$0xff]
        %v460 = vld [vmem:[%s296 + $0x10] sm:$0xff]
        %v461 = vld [vmem:[%s296 + $0x18] sm:$0xff]
        %v462 = vadd.f32 %v458, %v438
        %v463 = vadd.f32 %v459, %v439
        %v464 = vadd.f32 %v460, %v440
        %v465 = vadd.f32 %v461, %v441
        %466 = vst [vmem:[%s296] sm:$0xff] %v462
        %467 = vst [vmem:[%s296 + $0x8] sm:$0xff] %v463
        %468 = vst [vmem:[%s296 + $0x10] sm:$0xff] %v464
        %469 = vst [vmem:[%s296 + $0x18] sm:$0xff] %v465
        %v470 = vld [vmem:[%s303] sm:$0xff]
        %v471 = vld [vmem:[%s303 + $0x8] sm:$0xff]
        %v472 = vld [vmem:[%s303 + $0x10] sm:$0xff]
        %v473 = vld [vmem:[%s303 + $0x18] sm:$0xff]
        %v474 = vadd.f32 %v470, %v446
        %v475 = vadd.f32 %v471, %v447
        %v476 = vadd.f32 %v472, %v448
        %v477 = vadd.f32 %v473, %v449
        %478 = vst [vmem:[%s303] sm:$0xff] %v474
        %479 = vst [vmem:[%s303 + $0x8] sm:$0xff] %v475
        %480 = vst [vmem:[%s303 + $0x10] sm:$0xff] %v476
        %481 = vst [vmem:[%s303 + $0x18] sm:$0xff] %v477
        %v482 = vld [vmem:[%s310] sm:$0xff]
        %v483 = vadd.f32 %v482, %v457
        %484 = vst [vmem:[%s310] sm:$0xff] %v483
        %s485 = sand.u32 %s117, 1
        %s486 = scalar_lea.sflag [#allocation4], %s485
        %s487 = sand.u32 %s117, 1
        %s488 = smul.addr %s487, 32
        %s489 = scalar_lea.vmem [#allocation7], %s488
        %s490 = sand.u32 %s28, 1
        %s491 = scalar_lea.sflag [#allocation9], %s490
        %s492 = sand.u32 %s145, 1
        %s493 = smul.addr %s492, 32
        %s494 = scalar_lea.vmem [#allocation8], %s493
        %s495 = sand.u32 %s28, 1
        %s496 = scalar_lea.sflag [#allocation9], %s495
        %s497 = sand.u32 %s173, 1
        %s498 = smul.addr %s497, 8
        %s499 = scalar_lea.vmem [#allocation10], %s498
        // Predicated region
        $region41: #{tpu_custom_call.1} parent=27 // pred_check
          %p500 = pneg %p127
        $region42: #{tpu_custom_call.1} parent=27 // pred_check_branch
          %502 = sbr.rel (%p500) target = $region44
        $region43: #{tpu_custom_call.1} parent=27 // pred_region
          %s504 = ssub.s32 512, 512
          %505 = vsyncadd %s486, %s504
          %s506 = smul.addr %s34, 4
          %s507 = smul.addr %s33, 8
          %s508 = sadd.s32 %s506, %s507
          %s509 = smul.addr %s508, 128
          %s510 = scalar_lea.hbm %s2, %s509
          %s511 = sshll.u32 %s489, 4
          %s512 = int_to_ptr.vmem [resolvable:$true] %s511
          %517 = dma.vmem_to_hbm [thread:$0]  %s512, 512, %s510, %s486, 128, 128, 8
        $region44: #{tpu_custom_call.1} parent=27 // pred_fallthru
          _
        // Predicated region
        $region45: #{tpu_custom_call.1} parent=27 // pred_check
          %p518 = pneg %p155
        $region46: #{tpu_custom_call.1} parent=27 // pred_check_branch
          %520 = sbr.rel (%p518) target = $region48
        $region47: #{tpu_custom_call.1} parent=27 // pred_region
          %s522 = ssub.s32 512, 512
          %523 = vsyncadd %s491, %s522
          %s524 = smul.addr %s34, 4
          %s525 = smul.addr %s33, 8
          %s526 = sadd.s32 %s524, %s525
          %s527 = smul.addr %s526, 128
          %s528 = scalar_lea.hbm %s3, %s527
          %s529 = sshll.u32 %s494, 4
          %s530 = int_to_ptr.vmem [resolvable:$true] %s529
          %535 = dma.vmem_to_hbm [thread:$0]  %s530, 512, %s528, %s491, 128, 128, 8
        $region48: #{tpu_custom_call.1} parent=27 // pred_fallthru
          _
        // Predicated region
        $region49: #{tpu_custom_call.1} parent=27 // pred_check
          %p536 = pneg %p183
        $region50: #{tpu_custom_call.1} parent=27 // pred_check_branch
          %538 = sbr.rel (%p536) target = $region52
        $region51: #{tpu_custom_call.1} parent=27 // pred_region
          %s540 = ssub.s32 128, 128
          %541 = vsyncadd %s496, %s540
          %s542 = smul.addr %s33, 2
          %s543 = sadd.s32 %s34, %s542
          %s544 = smul.addr %s543, 128
          %s545 = scalar_lea.hbm %s4, %s544
          %s547 = sshll.u32 %s499, 4
          %s548 = int_to_ptr.vmem [resolvable:$true] %s547
          %550 = dma.vmem_to_hbm [thread:$0]  %s548, 128, %s545, %s496
        $region52: #{tpu_custom_call.1} parent=27 // pred_fallthru
          _
      $region28: #{tpu_custom_call.1} parent=5 // pred_fallthru
        _
      %p551 = scmp.le.s32.totalorder 2, %s23
      // Predicated region
      $region53: #{tpu_custom_call.1} parent=5 // pred_check
        %p552 = pneg %p551
      $region54: #{tpu_custom_call.1} parent=5 // pred_check_branch
        %554 = sbr.rel (%p552) target = $region56
      $region55: #{tpu_custom_call.1} parent=5 // pred_region
        %s555 = ssub.s32 %s23, 2
        // Predicated region
        $region57: #{tpu_custom_call.1} parent=55 // pred_check
          %p556 = pneg %p133
        $region58: #{tpu_custom_call.1} parent=55 // pred_check_branch
          %558 = sbr.rel (%p556) target = $region60
        $region59: #{tpu_custom_call.1} parent=55 // pred_region
          %s559 = sand.u32 %s118, 1
          %s560 = scalar_lea.sflag [#allocation4], %s559
          %s561 = sand.u32 %s118, 1
          %s562 = smul.addr %s561, 32
          %s563 = scalar_lea.vmem [#allocation7], %s562
          %564 = dma.done %s560, 512
        $region60: #{tpu_custom_call.1} parent=55 // pred_fallthru
          _
        // Predicated region
        $region61: #{tpu_custom_call.1} parent=55 // pred_check
          %p565 = pneg %p161
        $region62: #{tpu_custom_call.1} parent=55 // pred_check_branch
          %567 = sbr.rel (%p565) target = $region64
        $region63: #{tpu_custom_call.1} parent=55 // pred_region
          %s568 = sand.u32 %s29, 1
          %s569 = scalar_lea.sflag [#allocation9], %s568
          %s570 = sand.u32 %s146, 1
          %s571 = smul.addr %s570, 32
          %s572 = scalar_lea.vmem [#allocation8], %s571
          %573 = dma.done %s569, 512
        $region64: #{tpu_custom_call.1} parent=55 // pred_fallthru
          _
        // Predicated region
        $region65: #{tpu_custom_call.1} parent=55 // pred_check
          %p574 = pneg %p189
        $region66: #{tpu_custom_call.1} parent=55 // pred_check_branch
          %576 = sbr.rel (%p574) target = $region68
        $region67: #{tpu_custom_call.1} parent=55 // pred_region
          %s577 = sand.u32 %s29, 1
          %s578 = scalar_lea.sflag [#allocation9], %s577
          %s579 = sand.u32 %s174, 1
          %s580 = smul.addr %s579, 8
          %s581 = scalar_lea.vmem [#allocation10], %s580
          %582 = dma.done %s578, 128
        $region68: #{tpu_custom_call.1} parent=55 // pred_fallthru
          _
      $region56: #{tpu_custom_call.1} parent=5 // pred_fallthru
        _
    $region6: #{tpu_custom_call.1} parent=1 // loop_footer
      %s27 = sadd.s32 1, %s23
    $region7: #{tpu_custom_call.1} parent=1 // loop_footer_branch
      %22 = sbr.rel target = $region3
    $region8: #{tpu_custom_call.1} parent=1 // loop_exit
      _
    %583 = vsyncpa [#allocation3], 1
    %s584 = scalar_lea.sflag [#allocation3], 1
    %585 = vsyncpa %s584, 1
    %586 = vsyncpa [#allocation6], 1
    %s587 = scalar_lea.sflag [#allocation6], 1
    %588 = vsyncpa %s587, 1
    %589 = vsyncpa [#allocation4], 1
    %s590 = scalar_lea.sflag [#allocation4], 1
    %591 = vsyncpa %s590, 1
    %592 = vsyncpa [#allocation9], 1
    %s593 = scalar_lea.sflag [#allocation9], 1
    %594 = vsyncpa %s593, 1

</llo_original>
